<compile_context>
chip_gen: v7x
topology: tpu7x:2x2x1
jax: 0.10.0
libtpu: 0.0.40
codegen_flags: <defaults>
</compile_context>

<pallas_src>
import functools

import jax
import jax.numpy as jnp
from jax import lax
from jax.experimental import pallas as pl
from jax.experimental.pallas import tpu as pltpu

_LANE = 128


def _round_up(x, m):
    return ((x + m - 1) // m) * m


def _min_sublanes(dtype):
    # Minimal sublane tile per dtype: f32 -> 8, bf16 -> 16, int8/bool -> 32.
    bits = jnp.dtype(dtype).itemsize * 8
    return max(8, 256 // bits)


def _dice_partial_kernel(x_ref, t_ref, out_ref, acc_inter_ref, acc_sum_ref,
                         *, n_valid, block_rows, needs_mask):
    step = pl.program_id(0)

    @pl.when(step == 0)
    def _init():
        acc_inter_ref[...] = jnp.zeros_like(acc_inter_ref)
        acc_sum_ref[...] = jnp.zeros_like(acc_sum_ref)

    # Cast to f32 inside the kernel (hidden under DMA); sigmoid on the EUP.
    p = jax.nn.sigmoid(x_ref[...].astype(jnp.float32))
    t = t_ref[...].astype(jnp.float32)

    if needs_mask:
        # Mask out lane-padding and the out-of-bounds rows of the last block.
        # Row/lane split avoids any int32 overflow in the index math.
        row_idx = lax.broadcasted_iota(jnp.int32, (block_rows, _LANE), 0)
        lane_idx = lax.broadcasted_iota(jnp.int32, (block_rows, _LANE), 1)
        global_row = step * block_rows + row_idx
        full_rows = n_valid // _LANE          # static python ints
        rem = n_valid % _LANE
        valid = global_row < full_rows
        if rem:
            valid = valid | ((global_row == full_rows) & (lane_idx < rem))
        p = jnp.where(valid, p, 0.0)
        t = jnp.where(valid, t, 0.0)

    # Pure-VPU per-step accumulation into VMEM vector scratch.
    acc_inter_ref[...] += p * t
    acc_sum_ref[...] += p + t

    @pl.when(step == pl.num_programs(0) - 1)
    def _finalize():
        out_ref[0] = jnp.sum(acc_inter_ref[...])   # sum(sigmoid(x) * t)
        out_ref[1] = jnp.sum(acc_sum_ref[...])     # sum(sigmoid(x)) + sum(t)


@functools.partial(jax.jit, static_argnames=("smooth", "max_block_rows"))
def dice_loss(logits, targets, smooth=1.0, max_block_rows=1024):
    """JAX/Pallas equivalent of DiceLoss.forward(inputs, targets)."""
    assert logits.shape == targets.shape
    n = logits.size

    x = logits.reshape(-1)
    t = targets.reshape(-1)

    n_lane = _round_up(n, _LANE)
    if n_lane != n:
        # TODO(synk): this rare (n % 128 != 0) path pays one extra HBM copy for
        # the <128-element pad; padded elements are masked out in the kernel.
        x = jnp.pad(x, (0, n_lane - n))
        t = jnp.pad(t, (0, n_lane - n))

    rows = n_lane // _LANE
    row_align = max(_min_sublanes(x.dtype), _min_sublanes(t.dtype))
    block_rows = min(_round_up(max_block_rows, row_align),
                     _round_up(rows, row_align))
    grid_size = pl.cdiv(rows, block_rows)
    needs_mask = (grid_size * block_rows * _LANE) != n

    x2 = x.reshape(rows, _LANE)
    t2 = t.reshape(rows, _LANE)

    kernel = functools.partial(
        _dice_partial_kernel,
        n_valid=n, block_rows=block_rows, needs_mask=needs_mask)

    bytes_accessed = (x2.size * x2.dtype.itemsize
                      + t2.size * t2.dtype.itemsize + 2 * 4)

    sums = pl.pallas_call(
        kernel,
        out_shape=jax.ShapeDtypeStruct((2,), jnp.float32),
        grid_spec=pltpu.PrefetchScalarGridSpec(
            num_scalar_prefetch=0,
            grid=(grid_size,),
            in_specs=[
                pl.BlockSpec((block_rows, _LANE), lambda i: (i, 0)),
                pl.BlockSpec((block_rows, _LANE), lambda i: (i, 0)),
            ],
            out_specs=pl.BlockSpec(memory_space=pltpu.MemorySpace.SMEM),
            scratch_shapes=[
                pltpu.VMEM((block_rows, _LANE), jnp.float32),
                pltpu.VMEM((block_rows, _LANE), jnp.float32),
            ],
        ),
        compiler_params=pltpu.CompilerParams(
            dimension_semantics=("arbitrary",),
        ),
        cost_estimate=pl.CostEstimate(
            flops=6 * n, transcendentals=n, bytes_accessed=bytes_accessed),
    )(x2, t2)

    intersection = sums[0]
    denom = sums[1]                      # sum(p) + sum(t)
    dice = (2.0 * intersection + smooth) / (denom + smooth)
    return 1.0 - dice


def _dice_loss_ref(logits, targets, smooth=1.0):
    p = jax.nn.sigmoid(logits.astype(jnp.float32)).reshape(-1)
    t = targets.astype(jnp.float32).reshape(-1)
    inter = jnp.sum(p * t)
    dice = (2.0 * inter + smooth) / (jnp.sum(p) + jnp.sum(t) + smooth)
    return 1.0 - dice


if __name__ == "__main__":
    key = jax.random.PRNGKey(0)
    k1, k2, k3 = jax.random.split(key, 3)

    # Test 1: NCHW segmentation-head output, f32, single-block fast path.
    B, C, H, W = 2, 4, 16, 16
    logits = jax.random.normal(k1, (B, C, H, W), dtype=jnp.float32)
    targets = (jax.random.uniform(k2, (B, C, H, W)) > 0.5).astype(jnp.float32)

    loss = jax.block_until_ready(dice_loss(logits, targets, smooth=1.0))
    ref = _dice_loss_ref(logits, targets, smooth=1.0)
    assert jnp.allclose(loss, ref, atol=1e-5, rtol=1e-5), (loss, ref)

    # Test 2: same data, forced multi-step grid (exercises the cross-step
    # VMEM accumulator init / accumulate / finalize path).
    loss2 = jax.block_until_ready(
        dice_loss(logits, targets, smooth=1.0, max_block_rows=8))
    assert jnp.allclose(loss2, ref, atol=1e-5, rtol=1e-5), (loss2, ref)

    # Test 3: bf16 logits + non-128-divisible element count (pad + in-kernel
    # mask path) with a multi-step grid.
    shape3 = (2, 3, 37, 53)
    logits3 = jax.random.normal(k3, shape3, dtype=jnp.bfloat16)
    targets3 = (jax.random.uniform(k2, shape3) > 0.5).astype(jnp.float32)
    loss3 = jax.block_until_ready(
        dice_loss(logits3, targets3, smooth=1.0, max_block_rows=16))
    ref3 = _dice_loss_ref(logits3, targets3, smooth=1.0)
    assert jnp.allclose(loss3, ref3, atol=1e-4, rtol=1e-4), (loss3, ref3)

    print("KERNEL_OK")
</pallas_src>

<mosaic_0001>
module attributes {stable_mosaic.version = 11 : i64} {
  func.func @_dice_partial_kernel(%arg0: i32, %arg1: memref<16x128xf32, #tpu.memory_space<vmem>>, %arg2: memref<16x128xf32, #tpu.memory_space<vmem>>, %arg3: memref<2xf32, #tpu.memory_space<smem>>, %arg4: memref<16x128xf32, #tpu.memory_space<vmem>>, %arg5: memref<16x128xf32, #tpu.memory_space<vmem>>) attributes {dimension_semantics = [#tpu.dimension_semantics<arbitrary>], iteration_bounds = array<i64: 1>, scalar_prefetch = 0 : i64, scratch_operands = 2 : i64, tpu.core_type = #tpu.core_type<tc>, window_params = [{transform_indices = @transform_0, window_bounds = array<i64: 16, 128>}, {transform_indices = @transform_1, window_bounds = array<i64: 16, 128>}, {transform_indices = @transform_2, window_bounds = array<i64: 2>}]} {
    %c0_i32 = arith.constant 0 : i32
    %0 = arith.cmpi eq, %arg0, %c0_i32 : i32
    %1 = arith.extui %0 : i1 to i32
    %c0_i32_0 = arith.constant 0 : i32
    %2 = arith.cmpi ne, %1, %c0_i32_0 : i32
    scf.if %2 {
      %cst_14 = arith.constant 0.000000e+00 : f32
      %21 = vector.broadcast %cst_14 : f32 to vector<16x128xf32>
      %c0_15 = arith.constant 0 : index
      %c0_16 = arith.constant 0 : index
      %22 = vector.load %arg4[%c0_15, %c0_16] : memref<16x128xf32, #tpu.memory_space<vmem>>, vector<16x128xf32>
      tpu.vector_store %arg4[%c0_15, %c0_16], %21 {strides = array<i32>} : memref<16x128xf32, #tpu.memory_space<vmem>>, vector<16x128xf32>,
      %cst_17 = arith.constant 0.000000e+00 : f32
      %23 = vector.broadcast %cst_17 : f32 to vector<16x128xf32>
      %c0_18 = arith.constant 0 : index
      %c0_19 = arith.constant 0 : index
      %24 = vector.load %arg5[%c0_18, %c0_19] : memref<16x128xf32, #tpu.memory_space<vmem>>, vector<16x128xf32>
      tpu.vector_store %arg5[%c0_18, %c0_19], %23 {strides = array<i32>} : memref<16x128xf32, #tpu.memory_space<vmem>>, vector<16x128xf32>,
    } else {
    }
    %c0 = arith.constant 0 : index
    %c0_1 = arith.constant 0 : index
    %3 = vector.load %arg1[%c0, %c0_1] : memref<16x128xf32, #tpu.memory_space<vmem>>, vector<16x128xf32>
    %4 = arith.negf %3 : vector<16x128xf32>
    %5 = math.exp %4 : vector<16x128xf32>
    %cst = arith.constant 1.000000e+00 : f32
    %6 = vector.broadcast %cst : f32 to vector<16x128xf32>
    %7 = arith.addf %6, %5 : vector<16x128xf32>
    %8 = arith.divf %6, %7 : vector<16x128xf32>
    %c0_2 = arith.constant 0 : index
    %c0_3 = arith.constant 0 : index
    %9 = vector.load %arg2[%c0_2, %c0_3] : memref<16x128xf32, #tpu.memory_space<vmem>>, vector<16x128xf32>
    %c0_4 = arith.constant 0 : index
    %c0_5 = arith.constant 0 : index
    %10 = vector.load %arg4[%c0_4, %c0_5] : memref<16x128xf32, #tpu.memory_space<vmem>>, vector<16x128xf32>
    %11 = arith.mulf %8, %9 : vector<16x128xf32>
    %12 = arith.addf %10, %11 : vector<16x128xf32>
    %c0_6 = arith.constant 0 : index
    %c0_7 = arith.constant 0 : index
    %13 = vector.load %arg4[%c0_6, %c0_7] : memref<16x128xf32, #tpu.memory_space<vmem>>, vector<16x128xf32>
    tpu.vector_store %arg4[%c0_6, %c0_7], %12 {strides = array<i32>} : memref<16x128xf32, #tpu.memory_space<vmem>>, vector<16x128xf32>,
    %c0_8 = arith.constant 0 : index
    %c0_9 = arith.constant 0 : index
    %14 = vector.load %arg5[%c0_8, %c0_9] : memref<16x128xf32, #tpu.memory_space<vmem>>, vector<16x128xf32>
    %15 = arith.addf %8, %9 : vector<16x128xf32>
    %16 = arith.addf %14, %15 : vector<16x128xf32>
    %c0_10 = arith.constant 0 : index
    %c0_11 = arith.constant 0 : index
    %17 = vector.load %arg5[%c0_10, %c0_11] : memref<16x128xf32, #tpu.memory_space<vmem>>, vector<16x128xf32>
    tpu.vector_store %arg5[%c0_10, %c0_11], %16 {strides = array<i32>} : memref<16x128xf32, #tpu.memory_space<vmem>>, vector<16x128xf32>,
    %c0_i32_12 = arith.constant 0 : i32
    %18 = arith.cmpi eq, %arg0, %c0_i32_12 : i32
    %19 = arith.extui %18 : i1 to i32
    %c0_i32_13 = arith.constant 0 : i32
    %20 = arith.cmpi ne, %19, %c0_i32_13 : i32
    scf.if %20 {
      %c0_14 = arith.constant 0 : index
      %c0_15 = arith.constant 0 : index
      %21 = vector.load %arg4[%c0_14, %c0_15] : memref<16x128xf32, #tpu.memory_space<vmem>>, vector<16x128xf32>
      %22 = vector.shape_cast %21 : vector<16x128xf32> to vector<1x16x128xf32>
      %cst_16 = arith.constant dense<0.000000e+00> : vector<1xf32>
      %23 = vector.multi_reduction <add>, %22, %cst_16 [1, 2] : vector<1x16x128xf32> to vector<1xf32>
      %24 = vector.shape_cast %23 : vector<1xf32> to vector<1x1x1xf32>
      %25 = vector.extract %24[0, 0, 0] : f32 from vector<1x1x1xf32>
      %c0_17 = arith.constant 0 : index
      %26 = memref.load %arg3[%c0_17] : memref<2xf32, #tpu.memory_space<smem>>
      memref.store %25, %arg3[%c0_17] : memref<2xf32, #tpu.memory_space<smem>>
      %c0_18 = arith.constant 0 : index
      %c0_19 = arith.constant 0 : index
      %27 = vector.load %arg5[%c0_18, %c0_19] : memref<16x128xf32, #tpu.memory_space<vmem>>, vector<16x128xf32>
      %28 = vector.shape_cast %27 : vector<16x128xf32> to vector<1x16x128xf32>
      %cst_20 = arith.constant dense<0.000000e+00> : vector<1xf32>
      %29 = vector.multi_reduction <add>, %28, %cst_20 [1, 2] : vector<1x16x128xf32> to vector<1xf32>
      %30 = vector.shape_cast %29 : vector<1xf32> to vector<1x1x1xf32>
      %31 = vector.extract %30[0, 0, 0] : f32 from vector<1x1x1xf32>
      %c1 = arith.constant 1 : index
      %32 = memref.load %arg3[%c1] : memref<2xf32, #tpu.memory_space<smem>>
      memref.store %31, %arg3[%c1] : memref<2xf32, #tpu.memory_space<smem>>
    } else {
    }
    return
  }
  func.func @transform_0(%arg0: i32) -> (i32, i32) {
    %c0_i32 = arith.constant 0 : i32
    %c0_i32_0 = arith.constant 0 : i32
    return %arg0, %c0_i32 : i32, i32
  }
  func.func @transform_1(%arg0: i32) -> (i32, i32) {
    %c0_i32 = arith.constant 0 : i32
    %c0_i32_0 = arith.constant 0 : i32
    return %arg0, %c0_i32 : i32, i32
  }
  func.func @transform_2(%arg0: i32) -> i32 {
    %c0_i32 = arith.constant 0 : i32
    %c0_i32_0 = arith.constant 0 : i32
    return %c0_i32 : i32
  }
}

</mosaic_0001>

<llo_original>
// kernel: dice_loss.1
$region0: #{dice_loss.1}
  #allocation0 [shape = 'u32[]', space=smem, size = 0x4, offset = 0x4, fixed_abs, tag = 'smem constant byte address 0x4 - core index']
  #allocation1 [shape = 'u32[144,128]{1,0:T(1,128)}', space=vmem, size = 0x12000, scoped, tag = 'internal scratch']
  #allocation2 [shape = 'f32[16,128]{1,0:T(8,128)}', space=vmem, size = 0x2000, scoped, tag = 'scratch operand']
  #allocation3 [shape = 'f32[16,128]{1,0:T(8,128)}', space=vmem, size = 0x2000, scoped, tag = 'scratch operand']
  %s0 = inlined_call_operand.vmem [shape: f32[16,128], index: 0, kind: input, shape index: {}]
  %s1 = inlined_call_operand.vmem [shape: f32[16,128], index: 1, kind: input, shape index: {}]
  %s2 = inlined_call_operand.vmem [shape: f32[2], index: 2, kind: output, shape index: {}]
  %s3 = sld [smem:[#allocation0]]
  $region26: #{dice_loss.1} parent=0
    _
  %s5 = ssub.s32 1, %s3
  %s6 = scalar_select 0, %s5, %s3
  $region1: #{dice_loss.1} parent=0
    #allocation4 [shape = 'u8[512]{0}', space=smem, size = 0x200, scoped, tag = 'output window, operand 0, single buffered']
    #allocation5 [shape = 's32[1]{0}', space=sflag, size = 0x4, scoped, tag = 'scoped memory for dice_loss.1']
    %7 = vsyncpa [#allocation5], 0
    // Predicated region
    $region2: #{dice_loss.1} parent=1 // pred_check
      _
    $region3: #{dice_loss.1} parent=1 // pred_check_branch
      %9 = sbr.rel (0) target = $region5
    $region4: #{dice_loss.1} parent=1 // pred_region
      _
    $region5: #{dice_loss.1} parent=1 // pred_fallthru
      _
    // Predicated region
    $region6: #{dice_loss.1} parent=1 // pred_check
      _
    $region7: #{dice_loss.1} parent=1 // pred_check_branch
      %11 = sbr.rel (0) target = $region9
    $region8: #{dice_loss.1} parent=1 // pred_region
      _
    $region9: #{dice_loss.1} parent=1 // pred_fallthru
      _
    %p12 = scmp.eq.s32.totalorder 0, 0
    // Predicated region
    $region10: #{dice_loss.1} parent=1 // pred_check
      %p13 = pneg %p12
    $region11: #{dice_loss.1} parent=1 // pred_check_branch
      %15 = sbr.rel (%p13) target = $region13
    $region12: #{dice_loss.1} parent=1 // pred_region
      %16 = vst [vmem:[#allocation2] sm:$0xff] 0.0
      %17 = vst [vmem:[#allocation2 + $0x8] sm:$0xff] 0.0
      %18 = vst [vmem:[#allocation3] sm:$0xff] 0.0
      %19 = vst [vmem:[#allocation3 + $0x8] sm:$0xff] 0.0
    $region13: #{dice_loss.1} parent=1 // pred_fallthru
      _
    %v20 = vld [vmem:[%s0] sm:$0xff]
    %v21 = vld [vmem:[%s0 + $0x8] sm:$0xff]
    %v22 = vxor.u32 %v20, 2147483648
    %v23 = vxor.u32 %v21, 2147483648
    %v24 = vmul.f32 %v22, 1.442695
    %v25 = vpow.pop %v24
    %v26 = vmul.f32 %v23, 1.442695
    %v27 = vpow.pop %v26
    %v28 = vadd.f32 %v25, 1.0
    %v29 = vadd.f32 %v27, 1.0
    %v30 = vrcp.pop %v28
    %v31 = vmul.f32 1.0, %v30
    %v32 = vrcp.pop %v29
    %v33 = vmul.f32 1.0, %v32
    %v34 = vld [vmem:[%s1] sm:$0xff]
    %v35 = vld [vmem:[%s1 + $0x8] sm:$0xff]
    %v36 = vld [vmem:[#allocation2] sm:$0xff]
    %v37 = vld [vmem:[#allocation2 + $0x8] sm:$0xff]
    %v38 = vmul.f32 %v31, %v34
    %v39 = vmul.f32 %v33, %v35
    %v40 = vadd.f32 %v36, %v38
    %v41 = vadd.f32 %v37, %v39
    %42 = vst [vmem:[#allocation2] sm:$0xff] %v40
    %43 = vst [vmem:[#allocation2 + $0x8] sm:$0xff] %v41
    %v44 = vld [vmem:[#allocation3] sm:$0xff]
    %v45 = vld [vmem:[#allocation3 + $0x8] sm:$0xff]
    %v46 = vadd.f32 %v31, %v34
    %v47 = vadd.f32 %v33, %v35
    %v48 = vadd.f32 %v44, %v46
    %v49 = vadd.f32 %v45, %v47
    %50 = vst [vmem:[#allocation3] sm:$0xff] %v48
    %51 = vst [vmem:[#allocation3 + $0x8] sm:$0xff] %v49
    // Predicated region
    $region14: #{dice_loss.1} parent=1 // pred_check
      %p52 = pneg %p12
    $region15: #{dice_loss.1} parent=1 // pred_check_branch
      %54 = sbr.rel (%p52) target = $region17
    $region16: #{dice_loss.1} parent=1 // pred_region
      %v55 = vld [vmem:[#allocation2] sm:$0xff]
      %v56 = vld [vmem:[#allocation2 + $0x8] sm:$0xff]
      %v57 = vadd.f32 %v55, %v56
      %58 = vadd.xlane.f32.xlu0 %v57
      %v59 = vpop.xlane.xlu0 %58
      %v60 = vrot.slane %v59, 4
      %v61 = vadd.f32 %v59, %v60
      %v62 = vrot.slane %v61, 2
      %v63 = vadd.f32 %v61, %v62
      %v64 = vrot.slane %v63, 1
      %v65 = vadd.f32 %v63, %v64
      %s66 = vtos %v65
      %s67 = scalar_lea.smem [#allocation4], 0
      %68 = sst [smem:[%s67]] %s66
      %v69 = vld [vmem:[#allocation3] sm:$0xff]
      %v70 = vld [vmem:[#allocation3 + $0x8] sm:$0xff]
      %v71 = vadd.f32 %v69, %v70
      %72 = vadd.xlane.f32.xlu0 %v71
      %v73 = vpop.xlane.xlu0 %72
      %v74 = vrot.slane %v73, 4
      %v75 = vadd.f32 %v73, %v74
      %v76 = vrot.slane %v75, 2
      %v77 = vadd.f32 %v75, %v76
      %v78 = vrot.slane %v77, 1
      %v79 = vadd.f32 %v77, %v78
      %s80 = vtos %v79
      %s81 = scalar_lea.smem [#allocation4], 1
      %82 = sst [smem:[%s81]] %s80
    $region17: #{dice_loss.1} parent=1 // pred_fallthru
      _
    // Predicated region
    $region18: #{dice_loss.1} parent=1 // pred_check
      _
    $region19: #{dice_loss.1} parent=1 // pred_check_branch
      %84 = sbr.rel (0) target = $region21
    $region20: #{dice_loss.1} parent=1 // pred_region
      %s86 = ssub.s32 16, 16
      %87 = vsyncadd [#allocation5], %s86
      %s89 = sshll.u32 %s2, 4
      %s90 = int_to_ptr.vmem [resolvable:$true] %s89
      %92 = dma.smem_to_vmem [#allocation4], 16, %s90, [#allocation5]
    $region21: #{dice_loss.1} parent=1 // pred_fallthru
      _
    // Predicated region
    $region22: #{dice_loss.1} parent=1 // pred_check
      _
    $region23: #{dice_loss.1} parent=1 // pred_check_branch
      %94 = sbr.rel (0) target = $region25
    $region24: #{dice_loss.1} parent=1 // pred_region
      %95 = dma.done [#allocation5], 16
    $region25: #{dice_loss.1} parent=1 // pred_fallthru
      _
    %96 = sfence
    %97 = vsyncpa [#allocation5], 1

</llo_original>
